<compile_context>
chip_gen: v5e
topology: v5e:2x2
jax: 0.10.0
libtpu: 0.0.40
codegen_flags: <defaults>
</compile_context>

<pallas_src>
import functools

import jax
import jax.numpy as jnp
from jax.experimental import pallas as pl
from jax.experimental.pallas import tpu as pltpu

STATE_DIM = 240           # must be >= 240 because of the x[180:240] slice
ACTION_DIM = 60
N_LATENT = 64
HAND_LO, HAND_HI = 180, 240
LANE = 128                # lane width; all feature dims padded to this
K_PAD = 256               # contraction dim of the first matmul, padded 240->256
NEG = -1e30               # bias mask for padded action lanes
MXU_DT = jnp.bfloat16     # MXU operand dtype (f32 accumulation & elementwise)


# --------------------------------------------------------------------------
# Kernel
# --------------------------------------------------------------------------
def _actor_kernel(x_ref, u_ref,                                   # per-row inputs
                  w13_ref, b1_ref, w2_ref, b2_ref, w3_ref, b3_ref,
                  alpha_ref,                                       # VMEM-resident params
                  out_ref):                                        # (TB, 128) f32 slab
    # Fused first matmul (bf16 operands, f32 accumulate):
    #   y[:, :128] = x @ [W1 | 0]            (l1 pre-activation, lane-padded)
    #   y[:, 128:] = x[:,180:240] @ W3b      (skip contribution to the logits)
    y = jnp.dot(x_ref[...], w13_ref[...], preferred_element_type=jnp.float32)

    al = alpha_ref[...]          # (2, 128): row 0 = l1 PReLU slope, row 1 = l2
    a1 = al[0:1, :]
    a2 = al[1:2, :]

    h1 = y[:, :LANE] + b1_ref[...]
    h1 = jnp.where(h1 > 0, h1, a1 * h1)          # PReLU in f32 (pad lanes stay 0)
    skip = y[:, LANE:]                           # (TB, 128), lanes >= 60 are 0

    h2 = jnp.dot(h1.astype(MXU_DT), w2_ref[...],
                 preferred_element_type=jnp.float32) + b2_ref[...]
    h2 = jnp.where(h2 > 0, h2, a2 * h2)

    logits = (jnp.dot(h2.astype(MXU_DT), w3_ref[...],
                      preferred_element_type=jnp.float32)
              + skip + b3_ref[...])              # pad lanes get -1e30 from b3

    # softmax(dim=-1): pad lanes underflow to exactly 0; exact reciprocal so the
    # emitted probabilities sum to 1 (PPO ratio safety).
    m = jnp.max(logits, axis=-1, keepdims=True)
    e = jnp.exp(logits - m)
    s = jnp.sum(e, axis=-1, keepdims=True)
    probs = e / s

    # Categorical(probs).sample() fused as an exponential race reusing e:
    #   argmax_i e_i / E_i,  E_i = -log(u_i) ~ Exp(1)   (u supplied externally).
    # Pad lanes have e == 0 -> race value 0 < any valid lane -> never selected.
    ee = -jnp.log(u_ref[...])
    z = e / ee
    zmax = jnp.max(z, axis=-1, keepdims=True)
    lanes = jax.lax.broadcasted_iota(jnp.int32, z.shape, 1)
    act = jnp.min(jnp.where(z >= zmax, lanes, jnp.int32(LANE)),
                  axis=-1, keepdims=True)        # (TB, 1) int32

    # Fold the action id (as f32) into lane 127 of the probs slab -> one
    # unmasked lane-dense store, no separate (TB,1) output DMA.
    out_ref[...] = jnp.where(lanes == (LANE - 1), act.astype(jnp.float32), probs)


# --------------------------------------------------------------------------
# Wrappers
# --------------------------------------------------------------------------
def _choose_tb(bp):
    """Pick the batch tile: as large as possible (<=128), multiple of 8, but
    keep grid >= 2 when there is enough work so both v7x TensorCores help."""
    tb = min(128, bp)
    if bp >= 16 and bp // tb < 2:
        tb = max(8, ((bp // 2) // 8) * 8)
    return tb


def actor_forward(x_batch, params, key):
    """x_batch: (B, STATE_DIM) f32 -> (probs (B, ACTION_DIM) f32, actions (B,) i32)."""
    x_batch = jnp.asarray(x_batch, jnp.float32)
    B = x_batch.shape[0]
    bp8 = ((B + 7) // 8) * 8
    TB = _choose_tb(bp8)
    Bp = ((bp8 + TB - 1) // TB) * TB

    # Pad batch rows and the contraction dim 240 -> 256; bf16 MXU operand.
    x_pad = jnp.zeros((Bp, K_PAD), jnp.float32).at[:B, :STATE_DIM].set(x_batch)
    x_pad = x_pad.astype(MXU_DT)

    # Per-row sampling noise, independent of the grid/tile layout.
    u = jax.random.uniform(key, (Bp, LANE), jnp.float32, minval=1e-7, maxval=1.0)

    full = lambda shape: pl.BlockSpec(shape, lambda i: (0, 0))    # VMEM-resident

    out = pl.pallas_call(
        _actor_kernel,
        out_shape=jax.ShapeDtypeStruct((Bp, LANE), jnp.float32),
        grid_spec=pltpu.PrefetchScalarGridSpec(
            num_scalar_prefetch=0,
            grid=(Bp // TB,),
            in_specs=[
                pl.BlockSpec((TB, K_PAD), lambda i: (i, 0)),      # x tile (bf16)
                pl.BlockSpec((TB, LANE), lambda i: (i, 0)),       # sampling noise
                full((K_PAD, 2 * LANE)),                          # w13 (bf16)
                full((1, LANE)),                                  # b1p
                full((LANE, LANE)),                               # w2p (bf16)
                full((1, LANE)),                                  # b2p
                full((LANE, LANE)),                               # w3p (bf16)
                full((1, LANE)),                                  # b3p (masked)
                full((2, LANE)),                                  # PReLU alphas
            ],
            out_specs=pl.BlockSpec((TB, LANE), lambda i: (i, 0)),
        ),
        compiler_params=pltpu.CompilerParams(
            dimension_semantics=("parallel",)),   # v7x: both TCs split the batch
    )(x_pad, u,
      params["w13"], params["b1p"], params["w2p"], params["b2p"],
      params["w3p"], params["b3p"], params["alphas"])

    probs = out[:B, :ACTION_DIM]
    actions = out[:B, LANE - 1].astype(jnp.int32)
    return probs, actions


def actor_critic_forward(state_input, params, key):
    """Mirrors ActorCritic.forward: (1, 2) tensor with the sampled action id in
    column 0 and 0.0 in column 1.  Also returns the action probabilities."""
    x2d = jnp.asarray(state_input, jnp.float32).reshape(1, STATE_DIM)
    probs, actions = actor_forward(x2d, params, key)
    out = jnp.zeros((1, 2), jnp.float32).at[0, 0].set(actions[0].astype(jnp.float32))
    return out, probs


# --------------------------------------------------------------------------
# Parameters (synthetic, PyTorch-Linear-like init; PReLU slope = 0.25 default)
# --------------------------------------------------------------------------
def init_params(key):
    ks = jax.random.split(key, 3)

    def lin(k, fan_in, fan_out):
        bound = 1.0 / jnp.sqrt(jnp.float32(fan_in))
        kw, kb = jax.random.split(k)
        w = jax.random.uniform(kw, (fan_in, fan_out), jnp.float32, -bound, bound)
        b = jax.random.uniform(kb, (1, fan_out), jnp.float32, -bound, bound)
        return w, b

    w1, b1 = lin(ks[0], STATE_DIM, N_LATENT)
    w2, b2 = lin(ks[1], N_LATENT, N_LATENT)
    w3, b3 = lin(ks[2], N_LATENT + (HAND_HI - HAND_LO), ACTION_DIM)
    w3a, w3b = w3[:N_LATENT], w3[N_LATENT:]
    a1 = jnp.float32(0.25)
    a2 = jnp.float32(0.25)

    # ---- fused / lane-padded tensors consumed by the kernel ----
    w13 = jnp.zeros((K_PAD, 2 * LANE), jnp.float32)
    w13 = w13.at[:STATE_DIM, :N_LATENT].set(w1)
    w13 = w13.at[HAND_LO:HAND_HI, LANE:LANE + ACTION_DIM].set(w3b)
    b1p = jnp.zeros((1, LANE), jnp.float32).at[:, :N_LATENT].set(b1)
    w2p = jnp.zeros((LANE, LANE), jnp.float32).at[:N_LATENT, :N_LATENT].set(w2)
    b2p = jnp.zeros((1, LANE), jnp.float32).at[:, :N_LATENT].set(b2)
    w3p = jnp.zeros((LANE, LANE), jnp.float32).at[:N_LATENT, :ACTION_DIM].set(w3a)
    b3p = jnp.full((1, LANE), NEG, jnp.float32).at[:, :ACTION_DIM].set(b3)
    alphas = jnp.stack([jnp.full((LANE,), a1), jnp.full((LANE,), a2)])  # (2,128)

    # NOTE: value_layer params are never used in ActorCritic.forward, so they
    # are not materialized here.
    raw = dict(w1=w1, b1=b1, w2=w2, b2=b2, w3a=w3a, w3b=w3b, b3=b3, a1=a1, a2=a2)
    return dict(raw=raw,
                w13=w13.astype(MXU_DT),                 # bf16 MXU operands
                w2p=w2p.astype(MXU_DT),
                w3p=w3p.astype(MXU_DT),
                b1p=b1p, b2p=b2p, b3p=b3p, alphas=alphas)


def actor_probs_ref(x2d, raw):
    """Pure-JAX f32 reference of ActorMod.forward for correctness checking."""
    h1 = x2d @ raw["w1"] + raw["b1"]
    h1 = jnp.where(h1 > 0, h1, raw["a1"] * h1)
    h2 = h1 @ raw["w2"] + raw["b2"]
    h2 = jnp.where(h2 > 0, h2, raw["a2"] * h2)
    logits = (h2 @ raw["w3a"] + x2d[:, HAND_LO:HAND_HI] @ raw["w3b"] + raw["b3"])
    return jax.nn.softmax(logits, axis=-1)


# --------------------------------------------------------------------------
if __name__ == "__main__":
    key = jax.random.PRNGKey(0)
    k_params, k_state, k_batch, k_s1, k_s2 = jax.random.split(key, 5)
    params = init_params(k_params)

    # --- single-state path, as ActorCritic.forward consumes ---
    state = jax.random.uniform(k_state, (STATE_DIM,), jnp.float32)
    out, probs = actor_critic_forward(state, params, k_s1)
    out = jax.block_until_ready(out)
    probs = jax.block_until_ready(probs)

    assert out.shape == (1, 2)
    action = int(out[0, 0])
    assert 0 <= action < ACTION_DIM
    assert abs(float(jnp.sum(probs)) - 1.0) < 1e-3           # exact reciprocal
    # compare against the pure-f32 reference (kernel matmuls use bf16 operands)
    x2d = state.reshape(1, STATE_DIM)
    ref = actor_probs_ref(x2d, params["raw"])
    assert float(jnp.max(jnp.abs(probs - ref))) < 1e-2

    # --- batched path (grid > 1, 'parallel' batch axis; e.g. PPO minibatch) ---
    xb = jax.random.uniform(k_batch, (16, STATE_DIM), jnp.float32)
    probs_b, acts_b = actor_forward(xb, params, k_s2)
    probs_b = jax.block_until_ready(probs_b)
    acts_b = jax.block_until_ready(acts_b)
    assert probs_b.shape == (16, ACTION_DIM) and acts_b.shape == (16,)
    assert bool(jnp.all((acts_b >= 0) & (acts_b < ACTION_DIM)))
    assert float(jnp.max(jnp.abs(jnp.sum(probs_b, axis=-1) - 1.0))) < 1e-3
    ref_b = actor_probs_ref(xb, params["raw"])
    assert float(jnp.max(jnp.abs(probs_b - ref_b))) < 1e-2

    print("KERNEL_OK")
</pallas_src>

<mosaic_0001>
module attributes {stable_mosaic.version = 11 : i64} {
  func.func @_actor_kernel(%arg0: i32, %arg1: memref<8x256xbf16, #tpu.memory_space<vmem>>, %arg2: memref<8x128xf32, #tpu.memory_space<vmem>>, %arg3: memref<256x256xbf16, #tpu.memory_space<vmem>>, %arg4: memref<1x128xf32, #tpu.memory_space<vmem>>, %arg5: memref<128x128xbf16, #tpu.memory_space<vmem>>, %arg6: memref<1x128xf32, #tpu.memory_space<vmem>>, %arg7: memref<128x128xbf16, #tpu.memory_space<vmem>>, %arg8: memref<1x128xf32, #tpu.memory_space<vmem>>, %arg9: memref<2x128xf32, #tpu.memory_space<vmem>>, %arg10: memref<8x128xf32, #tpu.memory_space<vmem>>) attributes {dimension_semantics = [#tpu.dimension_semantics<parallel>], iteration_bounds = array<i64: 1>, scalar_prefetch = 0 : i64, scratch_operands = 0 : i64, tpu.core_type = #tpu.core_type<tc>, window_params = [{transform_indices = @transform_0, window_bounds = array<i64: 8, 256>}, {transform_indices = @transform_1, window_bounds = array<i64: 8, 128>}, {pipeline_mode = #tpu.pipeline_mode<synchronous>, transform_indices = @transform_2, window_bounds = array<i64: 256, 256>}, {pipeline_mode = #tpu.pipeline_mode<synchronous>, transform_indices = @transform_3, window_bounds = array<i64: 1, 128>}, {pipeline_mode = #tpu.pipeline_mode<synchronous>, transform_indices = @transform_4, window_bounds = array<i64: 128, 128>}, {pipeline_mode = #tpu.pipeline_mode<synchronous>, transform_indices = @transform_5, window_bounds = array<i64: 1, 128>}, {pipeline_mode = #tpu.pipeline_mode<synchronous>, transform_indices = @transform_6, window_bounds = array<i64: 128, 128>}, {pipeline_mode = #tpu.pipeline_mode<synchronous>, transform_indices = @transform_7, window_bounds = array<i64: 1, 128>}, {pipeline_mode = #tpu.pipeline_mode<synchronous>, transform_indices = @transform_8, window_bounds = array<i64: 2, 128>}, {transform_indices = @transform_9, window_bounds = array<i64: 8, 128>}]} {
    %c0 = arith.constant 0 : index
    %c0_0 = arith.constant 0 : index
    %0 = vector.load %arg1[%c0, %c0_0] : memref<8x256xbf16, #tpu.memory_space<vmem>>, vector<8x256xbf16>
    %c0_1 = arith.constant 0 : index
    %c0_2 = arith.constant 0 : index
    %1 = vector.load %arg3[%c0_1, %c0_2] : memref<256x256xbf16, #tpu.memory_space<vmem>>, vector<256x256xbf16>
    %cst = arith.constant dense<0.000000e+00> : vector<8x256xf32>
    %2 = tpu.matmul %0, %1, %cst {dimension_numbers = #tpu.dot_dimension_numbers<[1], [0], [0], [1], [0, 0, 1, 1], [], []>} : vector<8x256xbf16>, vector<256x256xbf16>, vector<8x256xf32> -> vector<8x256xf32>
    %c0_3 = arith.constant 0 : index
    %c0_4 = arith.constant 0 : index
    %3 = vector.load %arg9[%c0_3, %c0_4] : memref<2x128xf32, #tpu.memory_space<vmem>>, vector<2x128xf32>
    %4 = vector.extract_strided_slice %3 {offsets = [0, 0], sizes = [1, 128], strides = [1, 1]} : vector<2x128xf32> to vector<1x128xf32>
    %5 = vector.extract_strided_slice %3 {offsets = [1, 0], sizes = [1, 128], strides = [1, 1]} : vector<2x128xf32> to vector<1x128xf32>
    %6 = vector.extract_strided_slice %2 {offsets = [0, 0], sizes = [8, 128], strides = [1, 1]} : vector<8x256xf32> to vector<8x128xf32>
    %c0_5 = arith.constant 0 : index
    %c0_6 = arith.constant 0 : index
    %7 = vector.load %arg4[%c0_5, %c0_6] : memref<1x128xf32, #tpu.memory_space<vmem>>, vector<1x128xf32>
    %8 = vector.broadcast %7 : vector<1x128xf32> to vector<8x128xf32>
    %9 = arith.addf %6, %8 : vector<8x128xf32>
    %cst_7 = arith.constant 0.000000e+00 : f32
    %10 = vector.broadcast %cst_7 : f32 to vector<8x128xf32>
    %11 = arith.cmpf ogt, %9, %10 : vector<8x128xf32>
    %12 = vector.broadcast %4 : vector<1x128xf32> to vector<8x128xf32>
    %13 = arith.mulf %12, %9 : vector<8x128xf32>
    %14 = arith.select %11, %9, %13 : vector<8x128xi1>, vector<8x128xf32>
    %15 = vector.extract_strided_slice %2 {offsets = [0, 128], sizes = [8, 128], strides = [1, 1]} : vector<8x256xf32> to vector<8x128xf32>
    %16 = arith.truncf %14 : vector<8x128xf32> to vector<8x128xbf16>
    %c0_8 = arith.constant 0 : index
    %c0_9 = arith.constant 0 : index
    %17 = vector.load %arg5[%c0_8, %c0_9] : memref<128x128xbf16, #tpu.memory_space<vmem>>, vector<128x128xbf16>
    %cst_10 = arith.constant dense<0.000000e+00> : vector<8x128xf32>
    %18 = tpu.matmul %16, %17, %cst_10 {dimension_numbers = #tpu.dot_dimension_numbers<[1], [0], [0], [1], [0, 0, 1, 1], [], []>} : vector<8x128xbf16>, vector<128x128xbf16>, vector<8x128xf32> -> vector<8x128xf32>
    %c0_11 = arith.constant 0 : index
    %c0_12 = arith.constant 0 : index
    %19 = vector.load %arg6[%c0_11, %c0_12] : memref<1x128xf32, #tpu.memory_space<vmem>>, vector<1x128xf32>
    %20 = vector.broadcast %19 : vector<1x128xf32> to vector<8x128xf32>
    %21 = arith.addf %18, %20 : vector<8x128xf32>
    %cst_13 = arith.constant 0.000000e+00 : f32
    %22 = vector.broadcast %cst_13 : f32 to vector<8x128xf32>
    %23 = arith.cmpf ogt, %21, %22 : vector<8x128xf32>
    %24 = vector.broadcast %5 : vector<1x128xf32> to vector<8x128xf32>
    %25 = arith.mulf %24, %21 : vector<8x128xf32>
    %26 = arith.select %23, %21, %25 : vector<8x128xi1>, vector<8x128xf32>
    %27 = arith.truncf %26 : vector<8x128xf32> to vector<8x128xbf16>
    %c0_14 = arith.constant 0 : index
    %c0_15 = arith.constant 0 : index
    %28 = vector.load %arg7[%c0_14, %c0_15] : memref<128x128xbf16, #tpu.memory_space<vmem>>, vector<128x128xbf16>
    %cst_16 = arith.constant dense<0.000000e+00> : vector<8x128xf32>
    %29 = tpu.matmul %27, %28, %cst_16 {dimension_numbers = #tpu.dot_dimension_numbers<[1], [0], [0], [1], [0, 0, 1, 1], [], []>} : vector<8x128xbf16>, vector<128x128xbf16>, vector<8x128xf32> -> vector<8x128xf32>
    %30 = arith.addf %29, %15 : vector<8x128xf32>
    %c0_17 = arith.constant 0 : index
    %c0_18 = arith.constant 0 : index
    %31 = vector.load %arg8[%c0_17, %c0_18] : memref<1x128xf32, #tpu.memory_space<vmem>>, vector<1x128xf32>
    %32 = vector.broadcast %31 : vector<1x128xf32> to vector<8x128xf32>
    %33 = arith.addf %30, %32 : vector<8x128xf32>
    %cst_19 = arith.constant dense<0xFF800000> : vector<8xf32>
    %34 = vector.multi_reduction <maximumf>, %33, %cst_19 [1] : vector<8x128xf32> to vector<8xf32>
    %35 = vector.shape_cast %34 : vector<8xf32> to vector<8x1xf32>
    %36 = vector.broadcast %35 : vector<8x1xf32> to vector<8x128xf32>
    %37 = arith.subf %33, %36 : vector<8x128xf32>
    %38 = math.exp %37 : vector<8x128xf32>
    %cst_20 = arith.constant dense<0.000000e+00> : vector<8xf32>
    %39 = vector.multi_reduction <add>, %38, %cst_20 [1] : vector<8x128xf32> to vector<8xf32>
    %40 = vector.shape_cast %39 : vector<8xf32> to vector<8x1xf32>
    %41 = vector.broadcast %40 : vector<8x1xf32> to vector<8x128xf32>
    %42 = arith.divf %38, %41 : vector<8x128xf32>
    %c0_21 = arith.constant 0 : index
    %c0_22 = arith.constant 0 : index
    %43 = vector.load %arg2[%c0_21, %c0_22] : memref<8x128xf32, #tpu.memory_space<vmem>>, vector<8x128xf32>
    %44 = math.log %43 : vector<8x128xf32>
    %cst_23 = arith.constant 0.000000e+00 : f32
    %45 = vector.broadcast %cst_23 : f32 to vector<8x128xf32>
    %46 = arith.subf %45, %44 : vector<8x128xf32>
    %47 = arith.divf %38, %46 : vector<8x128xf32>
    %cst_24 = arith.constant dense<0xFF800000> : vector<8xf32>
    %48 = vector.multi_reduction <maximumf>, %47, %cst_24 [1] : vector<8x128xf32> to vector<8xf32>
    %49 = vector.shape_cast %48 : vector<8xf32> to vector<8x1xf32>
    %50 = tpu.iota {dimensions = array<i32: 1>} : vector<8x128xi32>
    %51 = vector.broadcast %49 : vector<8x1xf32> to vector<8x128xf32>
    %52 = arith.cmpf oge, %47, %51 : vector<8x128xf32>
    %c128_i32 = arith.constant 128 : i32
    %53 = vector.broadcast %c128_i32 : i32 to vector<8x128xi32>
    %54 = arith.select %52, %50, %53 : vector<8x128xi1>, vector<8x128xi32>
    %cst_25 = arith.constant dense<2147483647> : vector<8xi32>
    %55 = vector.multi_reduction <minsi>, %54, %cst_25 [1] : vector<8x128xi32> to vector<8xi32>
    %56 = vector.shape_cast %55 : vector<8xi32> to vector<8x1xi32>
    %c127_i32 = arith.constant 127 : i32
    %57 = vector.broadcast %c127_i32 : i32 to vector<8x128xi32>
    %58 = arith.cmpi eq, %50, %57 : vector<8x128xi32>
    %59 = arith.sitofp %56 : vector<8x1xi32> to vector<8x1xf32>
    %60 = vector.shape_cast %59 : vector<8x1xf32> to vector<8x1xf32>
    %61 = vector.broadcast %60 : vector<8x1xf32> to vector<8x128xf32>
    %62 = arith.select %58, %61, %42 : vector<8x128xi1>, vector<8x128xf32>
    %c0_26 = arith.constant 0 : index
    %c0_27 = arith.constant 0 : index
    %63 = vector.load %arg10[%c0_26, %c0_27] : memref<8x128xf32, #tpu.memory_space<vmem>>, vector<8x128xf32>
    tpu.vector_store %arg10[%c0_26, %c0_27], %62 {strides = array<i32>} : memref<8x128xf32, #tpu.memory_space<vmem>>, vector<8x128xf32>,
    return
  }
  func.func @transform_0(%arg0: i32) -> (i32, i32) {
    %c0_i32 = arith.constant 0 : i32
    %c0_i32_0 = arith.constant 0 : i32
    return %arg0, %c0_i32 : i32, i32
  }
  func.func @transform_1(%arg0: i32) -> (i32, i32) {
    %c0_i32 = arith.constant 0 : i32
    %c0_i32_0 = arith.constant 0 : i32
    return %arg0, %c0_i32 : i32, i32
  }
  func.func @transform_2(%arg0: i32) -> (i32, i32) {
    %c0_i32 = arith.constant 0 : i32
    %c0_i32_0 = arith.constant 0 : i32
    %c0_i32_1 = arith.constant 0 : i32
    return %c0_i32, %c0_i32_0 : i32, i32
  }
  func.func @transform_3(%arg0: i32) -> (i32, i32) {
    %c0_i32 = arith.constant 0 : i32
    %c0_i32_0 = arith.constant 0 : i32
    %c0_i32_1 = arith.constant 0 : i32
    return %c0_i32, %c0_i32_0 : i32, i32
  }
  func.func @transform_4(%arg0: i32) -> (i32, i32) {
    %c0_i32 = arith.constant 0 : i32
    %c0_i32_0 = arith.constant 0 : i32
    %c0_i32_1 = arith.constant 0 : i32
    return %c0_i32, %c0_i32_0 : i32, i32
  }
  func.func @transform_5(%arg0: i32) -> (i32, i32) {
    %c0_i32 = arith.constant 0 : i32
    %c0_i32_0 = arith.constant 0 : i32
    %c0_i32_1 = arith.constant 0 : i32
    return %c0_i32, %c0_i32_0 : i32, i32
  }
  func.func @transform_6(%arg0: i32) -> (i32, i32) {
    %c0_i32 = arith.constant 0 : i32
    %c0_i32_0 = arith.constant 0 : i32
    %c0_i32_1 = arith.constant 0 : i32
    return %c0_i32, %c0_i32_0 : i32, i32
  }
  func.func @transform_7(%arg0: i32) -> (i32, i32) {
    %c0_i32 = arith.constant 0 : i32
    %c0_i32_0 = arith.constant 0 : i32
    %c0_i32_1 = arith.constant 0 : i32
    return %c0_i32, %c0_i32_0 : i32, i32
  }
  func.func @transform_8(%arg0: i32) -> (i32, i32) {
    %c0_i32 = arith.constant 0 : i32
    %c0_i32_0 = arith.constant 0 : i32
    %c0_i32_1 = arith.constant 0 : i32
    return %c0_i32, %c0_i32_0 : i32, i32
  }
  func.func @transform_9(%arg0: i32) -> (i32, i32) {
    %c0_i32 = arith.constant 0 : i32
    %c0_i32_0 = arith.constant 0 : i32
    return %arg0, %c0_i32 : i32, i32
  }
}

</mosaic_0001>

<llo_original>
// kernel: tpu_custom_call.1
$region0: #{tpu_custom_call.1}
  #allocation0 [shape = 'u32[]', space=smem, size = 0x4, offset = 0x4, fixed_abs, tag = 'smem constant byte address 0x4 - core index']
  #allocation1 [shape = 'u32[72,128]{1,0:T(1,128)}', space=vmem, size = 0x9000, scoped, tag = 'internal scratch']
  %s0 = inlined_call_operand.hbm [shape: bf16[8,256], index: 0, kind: input, shape index: {}]
  %s1 = inlined_call_operand.hbm [shape: f32[8,128], index: 1, kind: input, shape index: {}]
  %s2 = inlined_call_operand.hbm [shape: bf16[256,256], index: 2, kind: input, shape index: {}]
  %s3 = inlined_call_operand.vmem [shape: f32[1,128], index: 3, kind: input, shape index: {}]
  %s4 = inlined_call_operand.hbm [shape: bf16[128,128], index: 4, kind: input, shape index: {}]
  %s5 = inlined_call_operand.vmem [shape: f32[1,128], index: 5, kind: input, shape index: {}]
  %s6 = inlined_call_operand.hbm [shape: bf16[128,128], index: 6, kind: input, shape index: {}]
  %s7 = inlined_call_operand.vmem [shape: f32[1,128], index: 7, kind: input, shape index: {}]
  %s8 = inlined_call_operand.vmem [shape: f32[2,128], index: 8, kind: input, shape index: {}]
  %s9 = inlined_call_operand.hbm [shape: f32[8,128], index: 9, kind: output, shape index: {}]
  %s10 = sld [smem:[#allocation0]]
  $region66: #{tpu_custom_call.1} parent=0
    _
  %s12 = ssub.s32 1, %s10
  %s13 = scalar_select 0, %s12, %s10
  $region1: #{tpu_custom_call.1} parent=0
    #allocation2 [shape = 'u8[4096]{0}', space=vmem, size = 0x1000, scoped, tag = 'input window, operand 0, single buffered']
    #allocation3 [shape = 's32[1]{0}', space=sflag, size = 0x4, scoped, tag = 'scoped memory for tpu_custom_call.1']
    #allocation4 [shape = 's32[1]{0}', space=sflag, size = 0x4, scoped, tag = 'scoped memory for tpu_custom_call.1']
    #allocation5 [shape = 'u8[4096]{0}', space=vmem, size = 0x1000, scoped, tag = 'input window, operand 1, single buffered']
    #allocation6 [shape = 's32[1]{0}', space=sflag, size = 0x4, scoped, tag = 'scoped memory for tpu_custom_call.1']
    #allocation7 [shape = 'u8[131072]{0}', space=vmem, size = 0x20000, scoped, tag = 'input window, operand 2, single buffered']
    #allocation8 [shape = 'u8[32768]{0}', space=vmem, size = 0x8000, scoped, tag = 'input window, operand 4, single buffered']
    #allocation9 [shape = 's32[1]{0}', space=sflag, size = 0x4, scoped, tag = 'scoped memory for tpu_custom_call.1']
    #allocation10 [shape = 'u8[32768]{0}', space=vmem, size = 0x8000, scoped, tag = 'input window, operand 6, single buffered']
    #allocation11 [shape = 'u8[4096]{0}', space=vmem, size = 0x1000, scoped, tag = 'output window, operand 0, single buffered']
    %14 = vsyncpa [#allocation3], 0
    %15 = vsyncpa [#allocation6], 0
    %16 = vsyncpa [#allocation9], 0
    %17 = vsyncpa [#allocation4], 0
    // Predicated region
    $region2: #{tpu_custom_call.1} parent=1 // pred_check
      _
    $region3: #{tpu_custom_call.1} parent=1 // pred_check_branch
      %19 = sbr.rel (0) target = $region5
    $region4: #{tpu_custom_call.1} parent=1 // pred_region
      %21 = vsyncadd [#allocation3], 0
      %s23 = sshll.u32 %s0, 4
      %s24 = int_to_ptr.hbm [resolvable:$true] %s23
      %s25 = sshll.u32 [#allocation2], 4
      %s26 = int_to_ptr.vmem [resolvable:$true] %s25
      %28 = dma.hbm_to_vmem [thread:$0]  %s24, 128, %s26, [#allocation3]
    $region5: #{tpu_custom_call.1} parent=1 // pred_fallthru
      _
    // Predicated region
    $region6: #{tpu_custom_call.1} parent=1 // pred_check
      _
    $region7: #{tpu_custom_call.1} parent=1 // pred_check_branch
      %30 = sbr.rel (0) target = $region9
    $region8: #{tpu_custom_call.1} parent=1 // pred_region
      %32 = vsyncadd [#allocation6], 0
      %s34 = sshll.u32 %s1, 4
      %s35 = int_to_ptr.hbm [resolvable:$true] %s34
      %s36 = sshll.u32 [#allocation5], 4
      %s37 = int_to_ptr.vmem [resolvable:$true] %s36
      %39 = dma.hbm_to_vmem [thread:$0]  %s35, 128, %s37, [#allocation6]
    $region9: #{tpu_custom_call.1} parent=1 // pred_fallthru
      _
    // Predicated region
    $region10: #{tpu_custom_call.1} parent=1 // pred_check
      _
    $region11: #{tpu_custom_call.1} parent=1 // pred_check_branch
      %41 = sbr.rel (0) target = $region13
    $region12: #{tpu_custom_call.1} parent=1 // pred_region
      %43 = vsyncadd [#allocation6], 0
      %s44 = sshll.u32 %s2, 4
      %s45 = int_to_ptr.hbm [resolvable:$true] %s44
      %s46 = sshll.u32 [#allocation7], 4
      %s47 = int_to_ptr.vmem [resolvable:$true] %s46
      %52 = dma.hbm_to_vmem [thread:$0]  %s45, 4096, %s47, [#allocation6], 128, 128, 8
    $region13: #{tpu_custom_call.1} parent=1 // pred_fallthru
      _
    // Predicated region
    $region14: #{tpu_custom_call.1} parent=1 // pred_check
      _
    $region15: #{tpu_custom_call.1} parent=1 // pred_check_branch
      %54 = sbr.rel (0) target = $region17
    $region16: #{tpu_custom_call.1} parent=1 // pred_region
      _
    $region17: #{tpu_custom_call.1} parent=1 // pred_fallthru
      _
    // Predicated region
    $region18: #{tpu_custom_call.1} parent=1 // pred_check
      _
    $region19: #{tpu_custom_call.1} parent=1 // pred_check_branch
      %56 = sbr.rel (0) target = $region21
    $region20: #{tpu_custom_call.1} parent=1 // pred_region
      %58 = vsyncadd [#allocation9], 0
      %s59 = sshll.u32 %s4, 4
      %s60 = int_to_ptr.hbm [resolvable:$true] %s59
      %s61 = sshll.u32 [#allocation8], 4
      %s62 = int_to_ptr.vmem [resolvable:$true] %s61
      %67 = dma.hbm_to_vmem [thread:$0]  %s60, 1024, %s62, [#allocation9], 64, 64, 4
    $region21: #{tpu_custom_call.1} parent=1 // pred_fallthru
      _
    // Predicated region
    $region22: #{tpu_custom_call.1} parent=1 // pred_check
      _
    $region23: #{tpu_custom_call.1} parent=1 // pred_check_branch
      %69 = sbr.rel (0) target = $region25
    $region24: #{tpu_custom_call.1} parent=1 // pred_region
      _
    $region25: #{tpu_custom_call.1} parent=1 // pred_fallthru
      _
    // Predicated region
    $region26: #{tpu_custom_call.1} parent=1 // pred_check
      _
    $region27: #{tpu_custom_call.1} parent=1 // pred_check_branch
      %71 = sbr.rel (0) target = $region29
    $region28: #{tpu_custom_call.1} parent=1 // pred_region
      %73 = vsyncadd [#allocation9], 0
      %s74 = sshll.u32 %s6, 4
      %s75 = int_to_ptr.hbm [resolvable:$true] %s74
      %s76 = sshll.u32 [#allocation10], 4
      %s77 = int_to_ptr.vmem [resolvable:$true] %s76
      %82 = dma.hbm_to_vmem [thread:$0]  %s75, 1024, %s77, [#allocation9], 64, 64, 4
    $region29: #{tpu_custom_call.1} parent=1 // pred_fallthru
      _
    // Predicated region
    $region30: #{tpu_custom_call.1} parent=1 // pred_check
      _
    $region31: #{tpu_custom_call.1} parent=1 // pred_check_branch
      %84 = sbr.rel (0) target = $region33
    $region32: #{tpu_custom_call.1} parent=1 // pred_region
      _
    $region33: #{tpu_custom_call.1} parent=1 // pred_fallthru
      _
    // Predicated region
    $region34: #{tpu_custom_call.1} parent=1 // pred_check
      _
    $region35: #{tpu_custom_call.1} parent=1 // pred_check_branch
      %86 = sbr.rel (0) target = $region37
    $region36: #{tpu_custom_call.1} parent=1 // pred_region
      _
    $region37: #{tpu_custom_call.1} parent=1 // pred_fallthru
      _
    // Predicated region
    $region38: #{tpu_custom_call.1} parent=1 // pred_check
      _
    $region39: #{tpu_custom_call.1} parent=1 // pred_check_branch
      %88 = sbr.rel (0) target = $region41
    $region40: #{tpu_custom_call.1} parent=1 // pred_region
      %90 = dma.done [#allocation3], 128
    $region41: #{tpu_custom_call.1} parent=1 // pred_fallthru
      _
    // Predicated region
    $region42: #{tpu_custom_call.1} parent=1 // pred_check
      _
    $region43: #{tpu_custom_call.1} parent=1 // pred_check_branch
      %92 = sbr.rel (0) target = $region45
    $region44: #{tpu_custom_call.1} parent=1 // pred_region
      %94 = dma.done [#allocation6], 128
    $region45: #{tpu_custom_call.1} parent=1 // pred_fallthru
      _
    // Predicated region
    $region46: #{tpu_custom_call.1} parent=1 // pred_check
      _
    $region47: #{tpu_custom_call.1} parent=1 // pred_check_branch
      %96 = sbr.rel (0) target = $region49
    $region48: #{tpu_custom_call.1} parent=1 // pred_region
      %98 = dma.done [#allocation6], 4096
    $region49: #{tpu_custom_call.1} parent=1 // pred_fallthru
      _
    // Predicated region
    $region50: #{tpu_custom_call.1} parent=1 // pred_check
      _
    $region51: #{tpu_custom_call.1} parent=1 // pred_check_branch
      %100 = sbr.rel (0) target = $region53
    $region52: #{tpu_custom_call.1} parent=1 // pred_region
      %102 = dma.done [#allocation9], 1024
    $region53: #{tpu_custom_call.1} parent=1 // pred_fallthru
      _
    // Predicated region
    $region54: #{tpu_custom_call.1} parent=1 // pred_check
      _
    $region55: #{tpu_custom_call.1} parent=1 // pred_check_branch
      %104 = sbr.rel (0) target = $region57
    $region56: #{tpu_custom_call.1} parent=1 // pred_region
      %106 = dma.done [#allocation9], 1024
    $region57: #{tpu_custom_call.1} parent=1 // pred_fallthru
      _
    %v107 = vld [vmem:[#allocation2] sm:$0xff]
    %v108 = vld [vmem:[#allocation7] sm:$0xff]
    %v109 = vld [vmem:[#allocation7 + $0x8] sm:$0xff]
    %v110 = vld [vmem:[#allocation7 + $0x10] sm:$0xff]
    %v111 = vld [vmem:[#allocation7 + $0x18] sm:$0xff]
    %v112 = vld [vmem:[#allocation7 + $0x20] sm:$0xff]
    %v113 = vld [vmem:[#allocation7 + $0x28] sm:$0xff]
    %v114 = vld [vmem:[#allocation7 + $0x30] sm:$0xff]
    %v115 = vld [vmem:[#allocation7 + $0x38] sm:$0xff]
    %v116 = vld [vmem:[#allocation7 + $0x40] sm:$0xff]
    %v117 = vld [vmem:[#allocation7 + $0x48] sm:$0xff]
    %v118 = vld [vmem:[#allocation7 + $0x50] sm:$0xff]
    %v119 = vld [vmem:[#allocation7 + $0x58] sm:$0xff]
    %v120 = vld [vmem:[#allocation7 + $0x60] sm:$0xff]
    %v121 = vld [vmem:[#allocation7 + $0x68] sm:$0xff]
    %v122 = vld [vmem:[#allocation7 + $0x70] sm:$0xff]
    %v123 = vld [vmem:[#allocation7 + $0x78] sm:$0xff]
    %v124 = vld [vmem:[#allocation7 + $0x80] sm:$0xff]
    %v125 = vld [vmem:[#allocation7 + $0x88] sm:$0xff]
    %v126 = vld [vmem:[#allocation7 + $0x90] sm:$0xff]
    %v127 = vld [vmem:[#allocation7 + $0x98] sm:$0xff]
    %v128 = vld [vmem:[#allocation7 + $0xa0] sm:$0xff]
    %v129 = vld [vmem:[#allocation7 + $0xa8] sm:$0xff]
    %v130 = vld [vmem:[#allocation7 + $0xb0] sm:$0xff]
    %v131 = vld [vmem:[#allocation7 + $0xb8] sm:$0xff]
    %v132 = vld [vmem:[#allocation7 + $0xc0] sm:$0xff]
    %v133 = vld [vmem:[#allocation7 + $0xc8] sm:$0xff]
    %v134 = vld [vmem:[#allocation7 + $0xd0] sm:$0xff]
    %v135 = vld [vmem:[#allocation7 + $0xd8] sm:$0xff]
    %v136 = vld [vmem:[#allocation7 + $0xe0] sm:$0xff]
    %v137 = vld [vmem:[#allocation7 + $0xe8] sm:$0xff]
    %v138 = vld [vmem:[#allocation7 + $0xf0] sm:$0xff]
    %v139 = vld [vmem:[#allocation7 + $0xf8] sm:$0xff]
    %v141 = vunpack.c.l.b16 %v107
    %v142 = vunpack.c.h.b16 %v107
    %v143 = vpack.c.b16 %v141, %v141
    %v144 = vpack.c.b16 %v142, %v142
    %v179 = vunpack.c.l.b16 %v108
    %v180 = vunpack.c.h.b16 %v108
    %v181 = vunpack.c.l.b16 %v109
    %v182 = vunpack.c.h.b16 %v109
    %v183 = vunpack.c.l.b16 %v110
    %v184 = vunpack.c.h.b16 %v110
    %v185 = vunpack.c.l.b16 %v111
    %v186 = vunpack.c.h.b16 %v111
    %v187 = vunpack.c.l.b16 %v112
    %v188 = vunpack.c.h.b16 %v112
    %v189 = vunpack.c.l.b16 %v113
    %v190 = vunpack.c.h.b16 %v113
    %v191 = vunpack.c.l.b16 %v114
    %v192 = vunpack.c.h.b16 %v114
    %v193 = vunpack.c.l.b16 %v115
    %v194 = vunpack.c.h.b16 %v115
    %v195 = vunpack.c.l.b16 %v116
    %v196 = vunpack.c.h.b16 %v116
    %v197 = vunpack.c.l.b16 %v117
    %v198 = vunpack.c.h.b16 %v117
    %v199 = vunpack.c.l.b16 %v118
    %v200 = vunpack.c.h.b16 %v118
    %v201 = vunpack.c.l.b16 %v119
    %v202 = vunpack.c.h.b16 %v119
    %v203 = vunpack.c.l.b16 %v120
    %v204 = vunpack.c.h.b16 %v120
    %v205 = vunpack.c.l.b16 %v121
    %v206 = vunpack.c.h.b16 %v121
    %v207 = vunpack.c.l.b16 %v122
    %v208 = vunpack.c.h.b16 %v122
    %v209 = vunpack.c.l.b16 %v123
    %v210 = vunpack.c.h.b16 %v123
    %v211 = vunpack.c.l.b16 %v124
    %v212 = vunpack.c.h.b16 %v124
    %v213 = vunpack.c.l.b16 %v125
    %v214 = vunpack.c.h.b16 %v125
    %v215 = vunpack.c.l.b16 %v126
    %v216 = vunpack.c.h.b16 %v126
    %v217 = vunpack.c.l.b16 %v127
    %v218 = vunpack.c.h.b16 %v127
    %v219 = vunpack.c.l.b16 %v128
    %v220 = vunpack.c.h.b16 %v128
    %v221 = vunpack.c.l.b16 %v129
    %v222 = vunpack.c.h.b16 %v129
    %v223 = vunpack.c.l.b16 %v130
    %v224 = vunpack.c.h.b16 %v130
    %v225 = vunpack.c.l.b16 %v131
    %v226 = vunpack.c.h.b16 %v131
    %v227 = vunpack.c.l.b16 %v132
    %v228 = vunpack.c.h.b16 %v132
    %v229 = vunpack.c.l.b16 %v133
    %v230 = vunpack.c.h.b16 %v133
    %v231 = vunpack.c.l.b16 %v134
    %v232 = vunpack.c.h.b16 %v134
    %v233 = vunpack.c.l.b16 %v135
    %v234 = vunpack.c.h.b16 %v135
    %v235 = vunpack.c.l.b16 %v136
    %v236 = vunpack.c.h.b16 %v136
    %v237 = vunpack.c.l.b16 %v137
    %v238 = vunpack.c.h.b16 %v137
    %v239 = vunpack.c.l.b16 %v138
    %v240 = vunpack.c.h.b16 %v138
    %v241 = vunpack.c.l.b16 %v139
    %v242 = vunpack.c.h.b16 %v139
    %v243 = vpack.c.b16 %v181, %v179
    %v244 = vpack.c.b16 %v182, %v180
    %v245 = vpack.c.b16 %v185, %v183
    %v246 = vpack.c.b16 %v186, %v184
    %v247 = vpack.c.b16 %v189, %v187
    %v248 = vpack.c.b16 %v190, %v188
    %v249 = vpack.c.b16 %v193, %v191
    %v250 = vpack.c.b16 %v194, %v192
    %v251 = vpack.c.b16 %v197, %v195
    %v252 = vpack.c.b16 %v198, %v196
    %v253 = vpack.c.b16 %v201, %v199
    %v254 = vpack.c.b16 %v202, %v200
    %v255 = vpack.c.b16 %v205, %v203
    %v256 = vpack.c.b16 %v206, %v204
    %v257 = vpack.c.b16 %v209, %v207
    %v258 = vpack.c.b16 %v210, %v208
    %v259 = vpack.c.b16 %v213, %v211
    %v260 = vpack.c.b16 %v214, %v212
    %v261 = vpack.c.b16 %v217, %v215
    %v262 = vpack.c.b16 %v218, %v216
    %v263 = vpack.c.b16 %v221, %v219
    %v264 = vpack.c.b16 %v222, %v220
    %v265 = vpack.c.b16 %v225, %v223
    %v266 = vpack.c.b16 %v226, %v224
    %v267 = vpack.c.b16 %v229, %v227
    %v268 = vpack.c.b16 %v230, %v228
    %v269 = vpack.c.b16 %v233, %v231
    %v270 = vpack.c.b16 %v234, %v232
    %v271 = vpack.c.b16 %v237, %v235
    %v272 = vpack.c.b16 %v238, %v236
    %v273 = vpack.c.b16 %v241, %v239
    %v274 = vpack.c.b16 %v242, %v240
    %307 = vmatpush.bf16.msra.mxu0 %v257
    %308 = vmatpush.bf16.msra.mxu0 %v255
    %309 = vmatpush.bf16.msra.mxu0 %v253
    %310 = vmatpush.bf16.msra.mxu0 %v251
    %311 = vmatpush.bf16.msra.mxu0 %v249
    %312 = vmatpush.bf16.msra.mxu0 %v247
    %313 = vmatpush.bf16.msra.mxu0 %v245
    %314 = vmatpush.bf16.msra.mxu0 %v243
    %315 = vmatmul.bf16.gmra.mxu0 %v143
    %v316 = vpop.f32.mrf.mxu0
    %v317 = vadd.f32 0.0, %v316
    %v318 = vpop.f32.mrf.mxu0
    %319 = vdwg.mxu0
    %320 = vmatpush.bf16.msra.mxu0 %v273
    %321 = vmatpush.bf16.msra.mxu0 %v271
    %322 = vmatpush.bf16.msra.mxu0 %v269
    %323 = vmatpush.bf16.msra.mxu0 %v267
    %324 = vmatpush.bf16.msra.mxu0 %v265
    %325 = vmatpush.bf16.msra.mxu0 %v263
    %326 = vmatpush.bf16.msra.mxu0 %v261
    %327 = vmatpush.bf16.msra.mxu0 %v259
    %328 = vmatmul.bf16.gmra.mxu0 %v144
    %v329 = vpop.f32.mrf.mxu0
    %v330 = vadd.f32 %v317, %v329
    %v331 = vpop.f32.mrf.mxu0
    %332 = vdwg.mxu0
    %333 = vmatpush.bf16.msra.mxu0 %v258
    %334 = vmatpush.bf16.msra.mxu0 %v256
    %335 = vmatpush.bf16.msra.mxu0 %v254
    %336 = vmatpush.bf16.msra.mxu0 %v252
    %337 = vmatpush.bf16.msra.mxu0 %v250
    %338 = vmatpush.bf16.msra.mxu0 %v248
    %339 = vmatpush.bf16.msra.mxu0 %v246
    %340 = vmatpush.bf16.msra.mxu0 %v244
    %341 = vmatmul.bf16.gmra.mxu0 %v143
    %v342 = vpop.f32.mrf.mxu0
    %v343 = vadd.f32 0.0, %v342
    %v344 = vpop.f32.mrf.mxu0
    %345 = vdwg.mxu0
    %346 = vmatpush.bf16.msra.mxu0 %v274
    %347 = vmatpush.bf16.msra.mxu0 %v272
    %348 = vmatpush.bf16.msra.mxu0 %v270
    %349 = vmatpush.bf16.msra.mxu0 %v268
    %350 = vmatpush.bf16.msra.mxu0 %v266
    %351 = vmatpush.bf16.msra.mxu0 %v264
    %352 = vmatpush.bf16.msra.mxu0 %v262
    %353 = vmatpush.bf16.msra.mxu0 %v260
    %354 = vmatmul.bf16.gmra.mxu0 %v144
    %v355 = vpop.f32.mrf.mxu0
    %v356 = vadd.f32 %v343, %v355
    %v357 = vpop.f32.mrf.mxu0
    %358 = vdwg.mxu0
    %v359 = vld [vmem:[%s8] sm:$0x3]
    %v360 = vld [vmem:[%s3] sm:$0x1]
    %v362 = vperm.slane %v360, 0
    %v364 = vadd.f32 %v330, %v362
    %vm365 = vcmp.gt.f32.partialorder %v364, 0.0
    %v366 = vperm.slane %v359, 0
    %v367 = vmul.f32 %v366, %v364
    %v368 = vsel %vm365, %v364, %v367
    %v369 = vpack.c.bf16 %v368, %v368
    %v370 = vld [vmem:[#allocation8] sm:$0xf]
    %v371 = vld [vmem:[#allocation8 + $0x4] sm:$0xf]
    %v372 = vld [vmem:[#allocation8 + $0x8] sm:$0xf]
    %v373 = vld [vmem:[#allocation8 + $0xc] sm:$0xf]
    %v374 = vld [vmem:[#allocation8 + $0x10] sm:$0xf]
    %v375 = vld [vmem:[#allocation8 + $0x14] sm:$0xf]
    %v376 = vld [vmem:[#allocation8 + $0x18] sm:$0xf]
    %v377 = vld [vmem:[#allocation8 + $0x1c] sm:$0xf]
    %v378 = vld [vmem:[#allocation8 + $0x20] sm:$0xf]
    %v379 = vld [vmem:[#allocation8 + $0x24] sm:$0xf]
    %v380 = vld [vmem:[#allocation8 + $0x28] sm:$0xf]
    %v381 = vld [vmem:[#allocation8 + $0x2c] sm:$0xf]
    %v382 = vld [vmem:[#allocation8 + $0x30] sm:$0xf]
    %v383 = vld [vmem:[#allocation8 + $0x34] sm:$0xf]
    %v384 = vld [vmem:[#allocation8 + $0x38] sm:$0xf]
    %v385 = vld [vmem:[#allocation8 + $0x3c] sm:$0xf]
    %v386 = vld [vmem:[%s5] sm:$0x1]
    %v388 = vperm.slane %v386, 0
    %v406 = vunpack.c.l.b16 %v370
    %v407 = vunpack.c.l.b16 %v371
    %v408 = vunpack.c.l.b16 %v372
    %v409 = vunpack.c.l.b16 %v373
    %v410 = vunpack.c.l.b16 %v374
    %v411 = vunpack.c.l.b16 %v375
    %v412 = vunpack.c.l.b16 %v376
    %v413 = vunpack.c.l.b16 %v377
    %v414 = vunpack.c.l.b16 %v378
    %v415 = vunpack.c.l.b16 %v379
    %v416 = vunpack.c.l.b16 %v380
    %v417 = vunpack.c.l.b16 %v381
    %v418 = vunpack.c.l.b16 %v382
    %v419 = vunpack.c.l.b16 %v383
    %v420 = vunpack.c.l.b16 %v384
    %v421 = vunpack.c.l.b16 %v385
    %v422 = vpack.c.b16 %v407, %v406
    %v423 = vpack.c.b16 %v409, %v408
    %v424 = vpack.c.b16 %v411, %v410
    %v425 = vpack.c.b16 %v413, %v412
    %v426 = vpack.c.b16 %v415, %v414
    %v427 = vpack.c.b16 %v417, %v416
    %v428 = vpack.c.b16 %v419, %v418
    %v429 = vpack.c.b16 %v421, %v420
    %438 = vmatpush.bf16.msra.mxu0 %v429
    %439 = vmatpush.bf16.msra.mxu0 %v428
    %440 = vmatpush.bf16.msra.mxu0 %v427
    %441 = vmatpush.bf16.msra.mxu0 %v426
    %442 = vmatpush.bf16.msra.mxu0 %v425
    %443 = vmatpush.bf16.msra.mxu0 %v424
    %444 = vmatpush.bf16.msra.mxu0 %v423
    %445 = vmatpush.bf16.msra.mxu0 %v422
    %446 = vmatmul.bf16.gmra.mxu0 %v369
    %v447 = vpop.f32.mrf.mxu0
    %v448 = vadd.f32 %v388, %v447
    %v449 = vpop.f32.mrf.mxu0
    %450 = vdwg.mxu0
    %vm451 = vcmp.gt.f32.partialorder %v448, 0.0
    %v452 = vperm.slane %v359, 1
    %v453 = vmul.f32 %v452, %v448
    %v454 = vsel %vm451, %v448, %v453
    %v455 = vpack.c.bf16 %v454, %v454
    %v456 = vld [vmem:[#allocation10] sm:$0xf]
    %v457 = vld [vmem:[#allocation10 + $0x4] sm:$0xf]
    %v458 = vld [vmem:[#allocation10 + $0x8] sm:$0xf]
    %v459 = vld [vmem:[#allocation10 + $0xc] sm:$0xf]
    %v460 = vld [vmem:[#allocation10 + $0x10] sm:$0xf]
    %v461 = vld [vmem:[#allocation10 + $0x14] sm:$0xf]
    %v462 = vld [vmem:[#allocation10 + $0x18] sm:$0xf]
    %v463 = vld [vmem:[#allocation10 + $0x1c] sm:$0xf]
    %v464 = vld [vmem:[#allocation10 + $0x20] sm:$0xf]
    %v465 = vld [vmem:[#allocation10 + $0x24] sm:$0xf]
    %v466 = vld [vmem:[#allocation10 + $0x28] sm:$0xf]
    %v467 = vld [vmem:[#allocation10 + $0x2c] sm:$0xf]
    %v468 = vld [vmem:[#allocation10 + $0x30] sm:$0xf]
    %v469 = vld [vmem:[#allocation10 + $0x34] sm:$0xf]
    %v470 = vld [vmem:[#allocation10 + $0x38] sm:$0xf]
    %v471 = vld [vmem:[#allocation10 + $0x3c] sm:$0xf]
    %v488 = vunpack.c.l.b16 %v456
    %v489 = vunpack.c.l.b16 %v457
    %v490 = vunpack.c.l.b16 %v458
    %v491 = vunpack.c.l.b16 %v459
    %v492 = vunpack.c.l.b16 %v460
    %v493 = vunpack.c.l.b16 %v461
    %v494 = vunpack.c.l.b16 %v462
    %v495 = vunpack.c.l.b16 %v463
    %v496 = vunpack.c.l.b16 %v464
    %v497 = vunpack.c.l.b16 %v465
    %v498 = vunpack.c.l.b16 %v466
    %v499 = vunpack.c.l.b16 %v467
    %v500 = vunpack.c.l.b16 %v468
    %v501 = vunpack.c.l.b16 %v469
    %v502 = vunpack.c.l.b16 %v470
    %v503 = vunpack.c.l.b16 %v471
    %v504 = vpack.c.b16 %v489, %v488
    %v505 = vpack.c.b16 %v491, %v490
    %v506 = vpack.c.b16 %v493, %v492
    %v507 = vpack.c.b16 %v495, %v494
    %v508 = vpack.c.b16 %v497, %v496
    %v509 = vpack.c.b16 %v499, %v498
    %v510 = vpack.c.b16 %v501, %v500
    %v511 = vpack.c.b16 %v503, %v502
    %520 = vmatpush.bf16.msra.mxu0 %v511
    %521 = vmatpush.bf16.msra.mxu0 %v510
    %522 = vmatpush.bf16.msra.mxu0 %v509
    %523 = vmatpush.bf16.msra.mxu0 %v508
    %524 = vmatpush.bf16.msra.mxu0 %v507
    %525 = vmatpush.bf16.msra.mxu0 %v506
    %526 = vmatpush.bf16.msra.mxu0 %v505
    %527 = vmatpush.bf16.msra.mxu0 %v504
    %528 = vmatmul.bf16.gmra.mxu0 %v455
    %v529 = vpop.f32.mrf.mxu0
    %v530 = vadd.f32 %v356, %v529
    %v531 = vpop.f32.mrf.mxu0
    %532 = vdwg.mxu0
    %v533 = vld [vmem:[%s7] sm:$0x1]
    %v535 = vperm.slane %v533, 0
    %v537 = vadd.f32 %v530, %v535
    %538 = vmax.xlane.f32.xlu0 %v537
    %v539 = vpop.xlane.xlu0 %538
    %v540 = vsub.f32 %v537, %v539
    %v541 = vmul.f32 %v540, 1.442695
    %v542 = vpow.pop %v541
    %543 = vadd.xlane.f32.xlu0 %v542
    %v544 = vpop.xlane.xlu0 %543
    %v545 = vrcp.pop %v544
    %v546 = vmul.f32 %v544, %v545
    %v547 = vsub.f32 1.0, %v546
    %v548 = vmul.f32 %v545, %v547
    %v549 = vadd.f32 %v545, %v548
    %vm550 = vweird.f32 %v544
    %vm551 = vweird.f32 %v545
    %vm552 = vmor %vm550, %vm551
    %v553 = vsel %vm552, %v545, %v549
    %v554 = vand.u32 2147483647, %v544
    %vm555 = vcmp.eq.f32.partialorder %v554, 8.507059e+37
    %v556 = vand.u32 %v544, 2147483648
    %v557 = vor.u32 1.1754944e-38, %v556
    %v558 = vsel %vm555, %v557, %v553
    %v559 = vmul.f32 %v542, %v558
    %v560 = vld [vmem:[#allocation5] sm:$0xff]
    %v561 = vlog2.pop %v560
    %v562 = vmul.f32 %v561, 0.6931472
    %v563 = vsub.f32 0.0, %v562
    %v564 = vrcp.pop %v563
    %v565 = vmul.f32 %v563, %v564
    %v566 = vsub.f32 1.0, %v565
    %v567 = vmul.f32 %v564, %v566
    %v568 = vadd.f32 %v564, %v567
    %vm569 = vweird.f32 %v563
    %vm570 = vweird.f32 %v564
    %vm571 = vmor %vm569, %vm570
    %v572 = vsel %vm571, %v564, %v568
    %v573 = vand.u32 2147483647, %v563
    %vm574 = vcmp.eq.f32.partialorder %v573, 8.507059e+37
    %v575 = vand.u32 %v563, 2147483648
    %v576 = vor.u32 1.1754944e-38, %v575
    %v577 = vsel %vm574, %v576, %v572
    %v578 = vmul.f32 %v542, %v577
    %579 = vmax.xlane.f32.xlu0 %v578
    %v580 = vpop.xlane.xlu0 %579
    %v581 = vlaneseq
    %v582 = vand.u32 %v581, 127
    %vm583 = vcmp.ge.f32.partialorder %v578, %v580
    %v584 = vsel %vm583, %v582, 128
    %v585 = vand.u32 %v584, 65535
    %v586 = vshra.s32 %v584, 16
    %v587 = vcvt.s32.f32 %v585
    %v588 = vcvt.s32.f32 %v586
    %589 = vmin.xlane.f32.xlu0 %v588
    %v590 = vpop.xlane.xlu0 %589
    %vm591 = vcmp.eq.f32.partialorder %v588, %v590
    %v592 = vsel %vm591, %v587, inf
    %593 = vmin.xlane.f32.xlu0 %v592
    %v594 = vpop.xlane.xlu0 %593
    %v595 = vcvt.f32.s32 %v594
    %v596 = vcvt.f32.s32 %v590
    %v597 = vshll.u32 %v596, 16
    %v598 = vadd.s32 %v597, %v595
    %vm599 = vcmp.eq.s32.totalorder %v582, 127
    %v600 = vcvt.s32.f32 %v598
    %v601 = vsel %vm599, %v600, %v559
    %602 = vst [vmem:[#allocation11] sm:$0xff] %v601
    // Predicated region
    $region58: #{tpu_custom_call.1} parent=1 // pred_check
      _
    $region59: #{tpu_custom_call.1} parent=1 // pred_check_branch
      %604 = sbr.rel (0) target = $region61
    $region60: #{tpu_custom_call.1} parent=1 // pred_region
      %606 = vsyncadd [#allocation4], 0
      %s608 = sshll.u32 [#allocation11], 4
      %s609 = int_to_ptr.vmem [resolvable:$true] %s608
      %s610 = sshll.u32 %s9, 4
      %s611 = int_to_ptr.hbm [resolvable:$true] %s610
      %613 = dma.vmem_to_hbm [thread:$0]  %s609, 128, %s611, [#allocation4]
    $region61: #{tpu_custom_call.1} parent=1 // pred_fallthru
      _
    // Predicated region
    $region62: #{tpu_custom_call.1} parent=1 // pred_check
      _
    $region63: #{tpu_custom_call.1} parent=1 // pred_check_branch
      %615 = sbr.rel (0) target = $region65
    $region64: #{tpu_custom_call.1} parent=1 // pred_region
      %617 = dma.done [#allocation4], 128
    $region65: #{tpu_custom_call.1} parent=1 // pred_fallthru
      _
    %618 = vsyncpa [#allocation3], 1
    %619 = vsyncpa [#allocation6], 1
    %620 = vsyncpa [#allocation9], 1
    %621 = vsyncpa [#allocation4], 1

</llo_original>
